<compile_context>
chip_gen: v7x
topology: tpu7x:2x2x1
jax: 0.10.0
libtpu: 0.0.40
codegen_flags: <defaults>
</compile_context>

<pallas_src>
import math
import functools

import jax
import jax.numpy as jnp
from jax.experimental import pallas as pl
from jax.experimental.pallas import tpu as pltpu


def _causal_memory_attention_kernel(
    decay_rate,
    q_ref,       # (TB, E)     bf16  (scale pre-folded into Wq^T / bq)
    mem_ref,     # (TB, S, E)  bf16
    ts_ref,      # (TB, S)     f32   (lane-major: S on lanes)
    ct_ref,      # (TB, 1)     f32
    wqt_ref,     # (E, E)      bf16  pre-transposed [in, out], pre-scaled
    bq_ref,      # (1, E)      f32   pre-scaled
    wkvt_ref,    # (E, 2E)     bf16  [Wk^T | Wv^T] fused along the out dim
    bkv_ref,     # (1, 2E)     f32
    attended_ref,  # (TB, E)   f32
    weights_ref,   # (TB, S)   f32
):
    TB, S, E = mem_ref.shape

    # ---- Projections on the MXU (bf16 in, f32 accumulate), batched over TB ---
    Q = jnp.dot(q_ref[...], wqt_ref[...],
                preferred_element_type=jnp.float32) + bq_ref[...]         # (TB, E)
    mem2 = mem_ref[...].reshape(TB * S, E)
    KV = jnp.dot(mem2, wkvt_ref[...],
                 preferred_element_type=jnp.float32) + bkv_ref[...]       # (TB*S, 2E)
    K = KV[:, :E].reshape(TB, S, E)
    V = KV[:, E:].reshape(TB, S, E)

    # ---- Attention scores (TB, S): VPU broadcast-multiply + reduce over E ----
    # TODO(synk): if a bundle dump shows the XLU (cross-lane/sublane reduces)
    # saturating at production S/E >= 128, move this and the w·V contraction
    # onto the MXU, which has large slack here.
    scores = jnp.sum(Q[:, None, :] * K, axis=-1)                          # (TB, S)

    # ---- Temporal decay weighting (f32, EUP exp), lane-major -----------------
    temporal = jnp.exp(-decay_rate * (ct_ref[...] - ts_ref[...]))         # (TB, S)
    scores = scores * temporal

    # causal_mask[-1] == last row of tril(ones) == all ones -> no masking needed.

    # ---- Softmax over the memory-slot (lane) axis -----------------------------
    m = jnp.max(scores, axis=-1, keepdims=True)                           # (TB, 1)
    e = jnp.exp(scores - m)                                               # (TB, S)
    w = e / jnp.sum(e, axis=-1, keepdims=True)                            # (TB, S)

    # ---- Weighted sum of values: broadcast multiply + reduce over S ----------
    attended = jnp.sum(w[:, :, None] * V, axis=1)                         # (TB, E)

    attended_ref[...] = attended.astype(attended_ref.dtype)
    weights_ref[...] = w.astype(weights_ref.dtype)


def causal_memory_attention(query, memory_bank, timestamps, current_time,
                            wq, bq, wk, bk, wv, bv, decay_rate=0.01):
    B, E = query.shape
    S = memory_bank.shape[1]
    scale = 1.0 / math.sqrt(E)

    # ---- Batch tiling: amortize grid-step overhead, feed the MXU M >= TB -----
    TB = min(B, 128)
    B_pad = TB * pl.cdiv(B, TB)
    if B_pad != B:
        pad = B_pad - B
        query = jnp.pad(query, ((0, pad), (0, 0)))
        memory_bank = jnp.pad(memory_bank, ((0, pad), (0, 0), (0, 0)))
        timestamps = jnp.pad(timestamps, ((0, pad), (0, 0)))
        current_time = jnp.pad(current_time, ((0, pad),))

    # -------- Wrapper-side layout plumbing (plain XLA, zero kernel cost) ------
    # Fold `scale` into Wq^T and bq: (q@WqT + bq)·K * scale == (q@(WqT*s) + bq*s)·K
    wqt = (wq.T * scale).astype(jnp.bfloat16)                              # [E, E]
    bq2 = (bq * scale).reshape(1, E).astype(jnp.float32)                   # [1, E]
    wkvt = jnp.concatenate([wk.T, wv.T], axis=1).astype(jnp.bfloat16)      # [E, 2E]
    bkv = jnp.concatenate([bk, bv]).reshape(1, 2 * E).astype(jnp.float32)  # [1, 2E]

    q2 = query.astype(jnp.bfloat16)                        # (B_pad, E)
    mem = memory_bank.astype(jnp.bfloat16)                 # (B_pad, S, E)
    ts2 = timestamps.astype(jnp.float32)                   # (B_pad, S)  lane-major
    ct2 = current_time.astype(jnp.float32).reshape(B_pad, 1)

    # ---- VMEM budget: resident weights (double-buffered) + pipelined tiles ---
    weight_bytes = (wqt.size + wkvt.size) * 2 + (bq2.size + bkv.size) * 4
    tile_bytes = (TB * E * 2 + TB * S * E * 2 + TB * S * 4 + TB * 4
                  + TB * E * 4 + TB * S * 4)
    vmem_limit = int(min(100 * 1024 * 1024,
                         max(32 * 1024 * 1024,
                             2 * weight_bytes + 4 * tile_bytes + (1 << 20))))
    # TODO(synk): for very large E (>~3k) on v7x (64 MiB physical VMEM), set
    # pipeline_mode=pl.Buffered(1) on the constant-index weight specs or add a
    # grid axis over the 2E output dim of wkvt; use pltpu.CORE_PARALLEL on the
    # batch-tile axis to engage v7x's second TensorCore.

    kernel = functools.partial(_causal_memory_attention_kernel, float(decay_rate))

    # Advisory cost estimate for XLA scheduling around the custom call.
    flops = int(2 * B_pad * E * E + 2 * B_pad * S * E * 2 * E + 4 * B_pad * S * E)
    transcendentals = int(2 * B_pad * S)
    bytes_accessed = int((q2.size + mem.size + wqt.size + wkvt.size) * 2
                         + (ts2.size + ct2.size + bq2.size + bkv.size
                            + B_pad * E + B_pad * S) * 4)

    attended, weights = pl.pallas_call(
        kernel,
        grid=(B_pad // TB,),
        out_shape=(jax.ShapeDtypeStruct((B_pad, E), jnp.float32),
                   jax.ShapeDtypeStruct((B_pad, S), jnp.float32)),
        in_specs=[
            pl.BlockSpec((TB, E), lambda b: (b, 0)),         # query
            pl.BlockSpec((TB, S, E), lambda b: (b, 0, 0)),   # memory_bank
            pl.BlockSpec((TB, S), lambda b: (b, 0)),         # timestamps
            pl.BlockSpec((TB, 1), lambda b: (b, 0)),         # current_time
            pl.BlockSpec((E, E), lambda b: (0, 0)),          # Wq^T  (resident)
            pl.BlockSpec((1, E), lambda b: (0, 0)),          # bq
            pl.BlockSpec((E, 2 * E), lambda b: (0, 0)),      # [Wk^T | Wv^T]
            pl.BlockSpec((1, 2 * E), lambda b: (0, 0)),      # [bk | bv]
        ],
        out_specs=(pl.BlockSpec((TB, E), lambda b: (b, 0)),  # lane-dense outputs
                   pl.BlockSpec((TB, S), lambda b: (b, 0))),
        compiler_params=pltpu.CompilerParams(
            dimension_semantics=("parallel",),
            vmem_limit_bytes=vmem_limit),
        cost_estimate=pl.CostEstimate(flops=flops,
                                      transcendentals=transcendentals,
                                      bytes_accessed=bytes_accessed),
    )(q2, mem, ts2, ct2, wqt, bq2, wkvt, bkv)

    # TODO(synk): for production shapes, pad S and E to multiples of 128
    # wrapper-side for fully unmasked lane-dense stores, and set
    # pipeline_mode=pl.Buffered(3) on the memory_bank spec if xprof shows
    # exposed DMA after batching.
    return attended[:B], weights[:B]


def _reference(query, memory_bank, timestamps, current_time,
               wq, bq, wk, bk, wv, bv, decay_rate=0.01):
    E = query.shape[-1]
    Q = query @ wq.T + bq
    K = memory_bank @ wk.T + bk
    V = memory_bank @ wv.T + bv
    scores = jnp.einsum('be,bse->bs', Q, K) / math.sqrt(E)
    temporal = jnp.exp(-decay_rate * (current_time[:, None] - timestamps))
    scores = scores * temporal
    w = jax.nn.softmax(scores, axis=-1)
    attended = jnp.einsum('bs,bse->be', w, V)
    return attended, w


if __name__ == "__main__":
    B, S, E = 2, 8, 32  # batch, seq_len (memory slots), embed_dim
    key = jax.random.PRNGKey(0)
    ks = jax.random.split(key, 10)

    # Inputs
    query = jax.random.normal(ks[0], (B, E), jnp.float32)
    memory_bank = jax.random.normal(ks[1], (B, S, E), jnp.float32)
    timestamps = jax.random.uniform(ks[2], (B, S), jnp.float32, 0.0, 10.0)
    current_time = jnp.full((B,), 12.0, jnp.float32)

    # Deterministic parameter init (nn.Linear: weight [out, in], bias [out])
    wq = 0.05 * jax.random.normal(ks[3], (E, E), jnp.float32)
    bq = 0.01 * jax.random.normal(ks[4], (E,), jnp.float32)
    wk = 0.05 * jax.random.normal(ks[5], (E, E), jnp.float32)
    bk = 0.01 * jax.random.normal(ks[6], (E,), jnp.float32)
    wv = 0.05 * jax.random.normal(ks[7], (E, E), jnp.float32)
    bv = 0.01 * jax.random.normal(ks[8], (E,), jnp.float32)

    attended, attn_weights = causal_memory_attention(
        query, memory_bank, timestamps, current_time,
        wq, bq, wk, bk, wv, bv, decay_rate=0.01)
    jax.block_until_ready((attended, attn_weights))

    ref_attended, ref_weights = _reference(
        query, memory_bank, timestamps, current_time,
        wq, bq, wk, bk, wv, bv, decay_rate=0.01)

    assert attended.shape == (B, E) and attn_weights.shape == (B, S)
    # Tolerances sized for bf16 MXU inputs (f32 accumulation).
    assert jnp.allclose(attn_weights, ref_weights, atol=5e-3, rtol=1e-2), "attn_weights mismatch"
    assert jnp.allclose(attended, ref_attended, atol=1e-2, rtol=1e-2), "attended mismatch"

    print("KERNEL_OK")
</pallas_src>

<mosaic_0001>
module attributes {stable_mosaic.version = 11 : i64} {
  func.func @_causal_memory_attention_kernel(%arg0: i32, %arg1: memref<2x32xbf16, #tpu.memory_space<vmem>>, %arg2: memref<2x8x32xbf16, #tpu.memory_space<vmem>>, %arg3: memref<2x8xf32, #tpu.memory_space<vmem>>, %arg4: memref<2x1xf32, #tpu.memory_space<vmem>>, %arg5: memref<32x32xbf16, #tpu.memory_space<vmem>>, %arg6: memref<1x32xf32, #tpu.memory_space<vmem>>, %arg7: memref<32x64xbf16, #tpu.memory_space<vmem>>, %arg8: memref<1x64xf32, #tpu.memory_space<vmem>>, %arg9: memref<2x32xf32, #tpu.memory_space<vmem>>, %arg10: memref<2x8xf32, #tpu.memory_space<vmem>>) attributes {dimension_semantics = [#tpu.dimension_semantics<parallel>], iteration_bounds = array<i64: 1>, scalar_prefetch = 0 : i64, scratch_operands = 0 : i64, tpu.core_type = #tpu.core_type<tc>, window_params = [{transform_indices = @transform_0, window_bounds = array<i64: 2, 32>}, {transform_indices = @transform_1, window_bounds = array<i64: 2, 8, 32>}, {transform_indices = @transform_2, window_bounds = array<i64: 2, 8>}, {transform_indices = @transform_3, window_bounds = array<i64: 2, 1>}, {pipeline_mode = #tpu.pipeline_mode<synchronous>, transform_indices = @transform_4, window_bounds = array<i64: 32, 32>}, {pipeline_mode = #tpu.pipeline_mode<synchronous>, transform_indices = @transform_5, window_bounds = array<i64: 1, 32>}, {pipeline_mode = #tpu.pipeline_mode<synchronous>, transform_indices = @transform_6, window_bounds = array<i64: 32, 64>}, {pipeline_mode = #tpu.pipeline_mode<synchronous>, transform_indices = @transform_7, window_bounds = array<i64: 1, 64>}, {transform_indices = @transform_8, window_bounds = array<i64: 2, 32>}, {transform_indices = @transform_9, window_bounds = array<i64: 2, 8>}]} {
    %c0 = arith.constant 0 : index
    %c0_0 = arith.constant 0 : index
    %0 = vector.load %arg1[%c0, %c0_0] : memref<2x32xbf16, #tpu.memory_space<vmem>>, vector<2x32xbf16>
    %c0_1 = arith.constant 0 : index
    %c0_2 = arith.constant 0 : index
    %1 = vector.load %arg5[%c0_1, %c0_2] : memref<32x32xbf16, #tpu.memory_space<vmem>>, vector<32x32xbf16>
    %cst = arith.constant dense<0.000000e+00> : vector<2x32xf32>
    %2 = tpu.matmul %0, %1, %cst {dimension_numbers = #tpu.dot_dimension_numbers<[1], [0], [0], [1], [0, 0, 1, 1], [], []>} : vector<2x32xbf16>, vector<32x32xbf16>, vector<2x32xf32> -> vector<2x32xf32>
    %c0_3 = arith.constant 0 : index
    %c0_4 = arith.constant 0 : index
    %3 = vector.load %arg6[%c0_3, %c0_4] : memref<1x32xf32, #tpu.memory_space<vmem>>, vector<1x32xf32>
    %4 = vector.broadcast %3 : vector<1x32xf32> to vector<2x32xf32>
    %5 = arith.addf %2, %4 : vector<2x32xf32>
    %c0_5 = arith.constant 0 : index
    %c0_6 = arith.constant 0 : index
    %c0_7 = arith.constant 0 : index
    %6 = vector.load %arg2[%c0_5, %c0_6, %c0_7] : memref<2x8x32xbf16, #tpu.memory_space<vmem>>, vector<2x8x32xbf16>
    %7 = vector.shape_cast %6 : vector<2x8x32xbf16> to vector<16x32xbf16>
    %c0_8 = arith.constant 0 : index
    %c0_9 = arith.constant 0 : index
    %8 = vector.load %arg7[%c0_8, %c0_9] : memref<32x64xbf16, #tpu.memory_space<vmem>>, vector<32x64xbf16>
    %cst_10 = arith.constant dense<0.000000e+00> : vector<16x64xf32>
    %9 = tpu.matmul %7, %8, %cst_10 {dimension_numbers = #tpu.dot_dimension_numbers<[1], [0], [0], [1], [0, 0, 1, 1], [], []>} : vector<16x32xbf16>, vector<32x64xbf16>, vector<16x64xf32> -> vector<16x64xf32>
    %c0_11 = arith.constant 0 : index
    %c0_12 = arith.constant 0 : index
    %10 = vector.load %arg8[%c0_11, %c0_12] : memref<1x64xf32, #tpu.memory_space<vmem>>, vector<1x64xf32>
    %11 = vector.broadcast %10 : vector<1x64xf32> to vector<16x64xf32>
    %12 = arith.addf %9, %11 : vector<16x64xf32>
    %13 = vector.extract_strided_slice %12 {offsets = [0, 0], sizes = [16, 32], strides = [1, 1]} : vector<16x64xf32> to vector<16x32xf32>
    %14 = vector.shape_cast %13 : vector<16x32xf32> to vector<2x8x32xf32>
    %15 = vector.extract_strided_slice %12 {offsets = [0, 32], sizes = [16, 32], strides = [1, 1]} : vector<16x64xf32> to vector<16x32xf32>
    %16 = vector.shape_cast %15 : vector<16x32xf32> to vector<2x8x32xf32>
    %17 = vector.shape_cast %5 : vector<2x32xf32> to vector<2x1x32xf32>
    %18 = vector.broadcast %17 : vector<2x1x32xf32> to vector<2x8x32xf32>
    %19 = arith.mulf %18, %14 : vector<2x8x32xf32>
    %cst_13 = arith.constant dense<0.000000e+00> : vector<2x8xf32>
    %20 = vector.multi_reduction <add>, %19, %cst_13 [2] : vector<2x8x32xf32> to vector<2x8xf32>
    %c0_14 = arith.constant 0 : index
    %c0_15 = arith.constant 0 : index
    %21 = vector.load %arg4[%c0_14, %c0_15] : memref<2x1xf32, #tpu.memory_space<vmem>>, vector<2x1xf32>
    %c0_16 = arith.constant 0 : index
    %c0_17 = arith.constant 0 : index
    %22 = vector.load %arg3[%c0_16, %c0_17] : memref<2x8xf32, #tpu.memory_space<vmem>>, vector<2x8xf32>
    %23 = vector.broadcast %21 : vector<2x1xf32> to vector<2x8xf32>
    %24 = arith.subf %23, %22 : vector<2x8xf32>
    %cst_18 = arith.constant -0.00999999977 : f32
    %25 = vector.broadcast %cst_18 : f32 to vector<2x8xf32>
    %26 = arith.mulf %25, %24 : vector<2x8xf32>
    %27 = math.exp %26 : vector<2x8xf32>
    %28 = arith.mulf %20, %27 : vector<2x8xf32>
    %cst_19 = arith.constant dense<0xFF800000> : vector<2xf32>
    %29 = vector.multi_reduction <maximumf>, %28, %cst_19 [1] : vector<2x8xf32> to vector<2xf32>
    %30 = vector.shape_cast %29 : vector<2xf32> to vector<2x1xf32>
    %31 = vector.broadcast %30 : vector<2x1xf32> to vector<2x8xf32>
    %32 = arith.subf %28, %31 : vector<2x8xf32>
    %33 = math.exp %32 : vector<2x8xf32>
    %cst_20 = arith.constant dense<0.000000e+00> : vector<2xf32>
    %34 = vector.multi_reduction <add>, %33, %cst_20 [1] : vector<2x8xf32> to vector<2xf32>
    %35 = vector.shape_cast %34 : vector<2xf32> to vector<2x1xf32>
    %36 = vector.broadcast %35 : vector<2x1xf32> to vector<2x8xf32>
    %37 = arith.divf %33, %36 : vector<2x8xf32>
    %38 = vector.shape_cast %37 : vector<2x8xf32> to vector<2x8x1xf32>
    %39 = vector.broadcast %38 : vector<2x8x1xf32> to vector<2x8x32xf32>
    %40 = arith.mulf %39, %16 : vector<2x8x32xf32>
    %cst_21 = arith.constant dense<0.000000e+00> : vector<2x32xf32>
    %41 = vector.multi_reduction <add>, %40, %cst_21 [1] : vector<2x8x32xf32> to vector<2x32xf32>
    %c0_22 = arith.constant 0 : index
    %c0_23 = arith.constant 0 : index
    %42 = vector.load %arg9[%c0_22, %c0_23] : memref<2x32xf32, #tpu.memory_space<vmem>>, vector<2x32xf32>
    tpu.vector_store %arg9[%c0_22, %c0_23], %41 {strides = array<i32>} : memref<2x32xf32, #tpu.memory_space<vmem>>, vector<2x32xf32>,
    %c0_24 = arith.constant 0 : index
    %c0_25 = arith.constant 0 : index
    %43 = vector.load %arg10[%c0_24, %c0_25] : memref<2x8xf32, #tpu.memory_space<vmem>>, vector<2x8xf32>
    tpu.vector_store %arg10[%c0_24, %c0_25], %37 {strides = array<i32>} : memref<2x8xf32, #tpu.memory_space<vmem>>, vector<2x8xf32>,
    return
  }
  func.func @transform_0(%arg0: i32) -> (i32, i32) {
    %c0_i32 = arith.constant 0 : i32
    %c0_i32_0 = arith.constant 0 : i32
    return %arg0, %c0_i32 : i32, i32
  }
  func.func @transform_1(%arg0: i32) -> (i32, i32, i32) {
    %c0_i32 = arith.constant 0 : i32
    %c0_i32_0 = arith.constant 0 : i32
    %c0_i32_1 = arith.constant 0 : i32
    return %arg0, %c0_i32, %c0_i32_0 : i32, i32, i32
  }
  func.func @transform_2(%arg0: i32) -> (i32, i32) {
    %c0_i32 = arith.constant 0 : i32
    %c0_i32_0 = arith.constant 0 : i32
    return %arg0, %c0_i32 : i32, i32
  }
  func.func @transform_3(%arg0: i32) -> (i32, i32) {
    %c0_i32 = arith.constant 0 : i32
    %c0_i32_0 = arith.constant 0 : i32
    return %arg0, %c0_i32 : i32, i32
  }
  func.func @transform_4(%arg0: i32) -> (i32, i32) {
    %c0_i32 = arith.constant 0 : i32
    %c0_i32_0 = arith.constant 0 : i32
    %c0_i32_1 = arith.constant 0 : i32
    return %c0_i32, %c0_i32_0 : i32, i32
  }
  func.func @transform_5(%arg0: i32) -> (i32, i32) {
    %c0_i32 = arith.constant 0 : i32
    %c0_i32_0 = arith.constant 0 : i32
    %c0_i32_1 = arith.constant 0 : i32
    return %c0_i32, %c0_i32_0 : i32, i32
  }
  func.func @transform_6(%arg0: i32) -> (i32, i32) {
    %c0_i32 = arith.constant 0 : i32
    %c0_i32_0 = arith.constant 0 : i32
    %c0_i32_1 = arith.constant 0 : i32
    return %c0_i32, %c0_i32_0 : i32, i32
  }
  func.func @transform_7(%arg0: i32) -> (i32, i32) {
    %c0_i32 = arith.constant 0 : i32
    %c0_i32_0 = arith.constant 0 : i32
    %c0_i32_1 = arith.constant 0 : i32
    return %c0_i32, %c0_i32_0 : i32, i32
  }
  func.func @transform_8(%arg0: i32) -> (i32, i32) {
    %c0_i32 = arith.constant 0 : i32
    %c0_i32_0 = arith.constant 0 : i32
    return %arg0, %c0_i32 : i32, i32
  }
  func.func @transform_9(%arg0: i32) -> (i32, i32) {
    %c0_i32 = arith.constant 0 : i32
    %c0_i32_0 = arith.constant 0 : i32
    return %arg0, %c0_i32 : i32, i32
  }
}

</mosaic_0001>

<llo_original>
// kernel: tpu_custom_call.1
$region0: #{tpu_custom_call.1}
  #allocation0 [shape = 'u32[]', space=smem, size = 0x4, offset = 0x4, fixed_abs, tag = 'smem constant byte address 0x4 - core index']
  #allocation1 [shape = 'u32[144,128]{1,0:T(1,128)}', space=vmem, size = 0x12000, scoped, tag = 'internal scratch']
  %s0 = inlined_call_operand.hbm [shape: bf16[2,32], index: 0, kind: input, shape index: {}]
  %s1 = inlined_call_operand.hbm [shape: bf16[2,8,32], index: 1, kind: input, shape index: {}]
  %s2 = inlined_call_operand.vmem [shape: f32[2,8], index: 2, kind: input, shape index: {}]
  %s3 = inlined_call_operand.vmem [shape: f32[2,1], index: 3, kind: input, shape index: {}]
  %s4 = inlined_call_operand.vmem [shape: bf16[32,32], index: 4, kind: input, shape index: {}]
  %s5 = inlined_call_operand.vmem [shape: f32[1,32], index: 5, kind: input, shape index: {}]
  %s6 = inlined_call_operand.hbm [shape: bf16[32,64], index: 6, kind: input, shape index: {}]
  %s7 = inlined_call_operand.vmem [shape: f32[1,64], index: 7, kind: input, shape index: {}]
  %s8 = inlined_call_operand.hbm [shape: f32[2,32], index: 8, kind: output, shape index: {0}]
  %s9 = inlined_call_operand.hbm [shape: f32[2,8], index: 9, kind: output, shape index: {1}]
  %10 = xla_tuple %s8, %s9
  %s11 = sld [smem:[#allocation0]]
  $region62: #{tpu_custom_call.1} parent=0
    _
  %s13 = ssub.s32 1, %s11
  %s14 = scalar_select 0, %s13, %s11
  $region1: #{tpu_custom_call.1} parent=0
    #allocation2 [shape = 'u8[512]{0}', space=vmem, size = 0x400, scoped, tag = 'input window, operand 0, single buffered']
    #allocation3 [shape = 's32[1]{0}', space=sflag, size = 0x4, scoped, tag = 'scoped memory for tpu_custom_call.1']
    #allocation4 [shape = 's32[1]{0}', space=sflag, size = 0x4, scoped, tag = 'scoped memory for tpu_custom_call.1']
    #allocation5 [shape = 'u8[4096]{0}', space=vmem, size = 0x1000, scoped, tag = 'input window, operand 1, single buffered']
    #allocation6 [shape = 's32[1]{0}', space=sflag, size = 0x4, scoped, tag = 'scoped memory for tpu_custom_call.1']
    #allocation7 [shape = 'u8[8192]{0}', space=vmem, size = 0x2000, scoped, tag = 'input window, operand 6, single buffered']
    #allocation8 [shape = 'u8[1024]{0}', space=vmem, size = 0x400, scoped, tag = 'output window, operand 0, single buffered']
    #allocation9 [shape = 'u8[1024]{0}', space=vmem, size = 0x400, scoped, tag = 'output window, operand 1, single buffered']
    #allocation10 [shape = 's32[1]{0}', space=sflag, size = 0x4, scoped, tag = 'scoped memory for tpu_custom_call.1']
    %15 = vsyncpa [#allocation3], 0
    %16 = vsyncpa [#allocation6], 0
    %17 = vsyncpa [#allocation4], 0
    %18 = vsyncpa [#allocation10], 0
    // Predicated region
    $region2: #{tpu_custom_call.1} parent=1 // pred_check
      _
    $region3: #{tpu_custom_call.1} parent=1 // pred_check_branch
      %20 = sbr.rel (0) target = $region5
    $region4: #{tpu_custom_call.1} parent=1 // pred_region
      %s22 = ssub.s32 16, 16
      %23 = vsyncadd [#allocation3], %s22
      %s25 = sshll.u32 [#allocation2], 4
      %s26 = int_to_ptr.vmem [resolvable:$true] %s25
      %28 = dma.hbm_to_vmem [thread:$0]  %s0, 16, %s26, [#allocation3]
    $region5: #{tpu_custom_call.1} parent=1 // pred_fallthru
      _
    // Predicated region
    $region6: #{tpu_custom_call.1} parent=1 // pred_check
      _
    $region7: #{tpu_custom_call.1} parent=1 // pred_check_branch
      %30 = sbr.rel (0) target = $region9
    $region8: #{tpu_custom_call.1} parent=1 // pred_region
      %s32 = ssub.s32 128, 128
      %33 = vsyncadd [#allocation6], %s32
      %s34 = sshll.u32 [#allocation5], 4
      %s35 = int_to_ptr.vmem [resolvable:$true] %s34
      %40 = dma.hbm_to_vmem [thread:$0]  %s1, 128, %s35, [#allocation6], 64, 64, 4
    $region9: #{tpu_custom_call.1} parent=1 // pred_fallthru
      _
    // Predicated region
    $region10: #{tpu_custom_call.1} parent=1 // pred_check
      _
    $region11: #{tpu_custom_call.1} parent=1 // pred_check_branch
      %42 = sbr.rel (0) target = $region13
    $region12: #{tpu_custom_call.1} parent=1 // pred_region
      _
    $region13: #{tpu_custom_call.1} parent=1 // pred_fallthru
      _
    // Predicated region
    $region14: #{tpu_custom_call.1} parent=1 // pred_check
      _
    $region15: #{tpu_custom_call.1} parent=1 // pred_check_branch
      %44 = sbr.rel (0) target = $region17
    $region16: #{tpu_custom_call.1} parent=1 // pred_region
      _
    $region17: #{tpu_custom_call.1} parent=1 // pred_fallthru
      _
    // Predicated region
    $region18: #{tpu_custom_call.1} parent=1 // pred_check
      _
    $region19: #{tpu_custom_call.1} parent=1 // pred_check_branch
      %46 = sbr.rel (0) target = $region21
    $region20: #{tpu_custom_call.1} parent=1 // pred_region
      _
    $region21: #{tpu_custom_call.1} parent=1 // pred_fallthru
      _
    // Predicated region
    $region22: #{tpu_custom_call.1} parent=1 // pred_check
      _
    $region23: #{tpu_custom_call.1} parent=1 // pred_check_branch
      %48 = sbr.rel (0) target = $region25
    $region24: #{tpu_custom_call.1} parent=1 // pred_region
      _
    $region25: #{tpu_custom_call.1} parent=1 // pred_fallthru
      _
    // Predicated region
    $region26: #{tpu_custom_call.1} parent=1 // pred_check
      _
    $region27: #{tpu_custom_call.1} parent=1 // pred_check_branch
      %50 = sbr.rel (0) target = $region29
    $region28: #{tpu_custom_call.1} parent=1 // pred_region
      %s52 = ssub.s32 256, 256
      %53 = vsyncadd [#allocation6], %s52
      %s54 = sshll.u32 [#allocation7], 4
      %s55 = int_to_ptr.vmem [resolvable:$true] %s54
      %60 = dma.hbm_to_vmem [thread:$0]  %s6, 256, %s55, [#allocation6], 64, 64, 4
    $region29: #{tpu_custom_call.1} parent=1 // pred_fallthru
      _
    // Predicated region
    $region30: #{tpu_custom_call.1} parent=1 // pred_check
      _
    $region31: #{tpu_custom_call.1} parent=1 // pred_check_branch
      %62 = sbr.rel (0) target = $region33
    $region32: #{tpu_custom_call.1} parent=1 // pred_region
      _
    $region33: #{tpu_custom_call.1} parent=1 // pred_fallthru
      _
    // Predicated region
    $region34: #{tpu_custom_call.1} parent=1 // pred_check
      _
    $region35: #{tpu_custom_call.1} parent=1 // pred_check_branch
      %64 = sbr.rel (0) target = $region37
    $region36: #{tpu_custom_call.1} parent=1 // pred_region
      %65 = dma.done [#allocation3], 16
    $region37: #{tpu_custom_call.1} parent=1 // pred_fallthru
      _
    // Predicated region
    $region38: #{tpu_custom_call.1} parent=1 // pred_check
      _
    $region39: #{tpu_custom_call.1} parent=1 // pred_check_branch
      %67 = sbr.rel (0) target = $region41
    $region40: #{tpu_custom_call.1} parent=1 // pred_region
      %68 = dma.done [#allocation6], 128
    $region41: #{tpu_custom_call.1} parent=1 // pred_fallthru
      _
    // Predicated region
    $region42: #{tpu_custom_call.1} parent=1 // pred_check
      _
    $region43: #{tpu_custom_call.1} parent=1 // pred_check_branch
      %70 = sbr.rel (0) target = $region45
    $region44: #{tpu_custom_call.1} parent=1 // pred_region
      %71 = dma.done [#allocation6], 256
    $region45: #{tpu_custom_call.1} parent=1 // pred_fallthru
      _
    %v73 = vld [vmem:[#allocation2] sm:$0x1]
    %v74 = vld [vmem:[%s4] sm:$0xf]
    %v75 = vld [vmem:[%s4 + $0x4] sm:$0xf]
    %v76 = vld [vmem:[%s4 + $0x8] sm:$0xf]
    %v77 = vld [vmem:[%s4 + $0xc] sm:$0xf]
    %v78 = vld [vmem:[%s5] sm:$0x1]
    %v80 = vlaneseq
    %v81 = vshrl.u32 %v80, 7
    %v82 = vsub.s32 0, %v81
    %v83 = vrot.slane %v78, %v82
    %v89 = vunpack.c.l.b16 %v74
    %v90 = vunpack.c.l.b16 %v75
    %v91 = vunpack.c.l.b16 %v76
    %v92 = vunpack.c.l.b16 %v77
    %v93 = vpack.c.b16 %v90, %v89
    %v94 = vpack.c.b16 %v92, %v91
    %vm97 = vcmask 261120
    %v99 = vsel %vm97, %v73, 0
    %101 = vmatprep.subr.bf16.mxu0 0
    %102 = vmatpush1.bf16.msra.mxu0 %v93
    %103 = vmatprep.subr.bf16.mxu0 0
    %104 = vmatpush1.bf16.msra.mxu0 %v94
    %105 = vmatprep.subr.bf16.mxu0 0
    %106 = vmatpush1.bf16.msra.mxu0 0
    %107 = vmatprep.subr.bf16.mxu0 0
    %108 = vmatpush1.bf16.msra.mxu0 0
    %109 = vmatprep.subr.bf16.mxu0 0
    %110 = vmatpush1.bf16.msra.mxu0 0
    %111 = vmatprep.subr.bf16.mxu0 0
    %112 = vmatpush1.bf16.msra.mxu0 0
    %113 = vmatprep.subr.bf16.mxu0 0
    %114 = vmatpush1.bf16.msra.mxu0 0
    %115 = vmatprep.subr.bf16.mxu0 0
    %116 = vmatpush1.bf16.msra.mxu0 0
    %117 = vmatprep.subr.bf16.mxu0 0
    %118 = vmatpush1.bf16.msra.mxu0 0
    %119 = vmatprep.subr.bf16.mxu0 0
    %120 = vmatpush1.bf16.msra.mxu0 0
    %121 = vmatprep.subr.bf16.mxu0 0
    %122 = vmatpush1.bf16.msra.mxu0 0
    %123 = vmatprep.subr.bf16.mxu0 0
    %124 = vmatpush1.bf16.msra.mxu0 0
    %125 = vmatprep.subr.bf16.mxu0 0
    %126 = vmatpush1.bf16.msra.mxu0 0
    %127 = vmatprep.subr.bf16.mxu0 0
    %128 = vmatpush1.bf16.msra.mxu0 0
    %129 = vmatprep.subr.bf16.mxu0 0
    %130 = vmatpush1.bf16.msra.mxu0 0
    %131 = vmatprep.subr.bf16.mxu0 0
    %132 = vmatpush1.bf16.msra.mxu0 0
    %133 = vmatprep.mubr.bf16.mxu0 0
    %134 = vmatmul.mubr.bf16.gmra.mrb[0].mxu0 %v99
    %v135 = vpop.f32.mrb[0].mxu0
    %v136 = vadd.f32 %v83, %v135
    %v137 = vpop.f32.mrb[0].mxu0
    %v138 = vpop.f32.mrb[0].mxu0
    %v139 = vpop.f32.mrb[0].mxu0
    %140 = vdwg.mxu0
    %v141 = vld [vmem:[#allocation5] sm:$0xf]
    %v142 = vld [vmem:[#allocation5 + $0x4] sm:$0xf]
    %v143 = vld [vmem:[#allocation7] sm:$0xf]
    %v144 = vld [vmem:[#allocation7 + $0x4] sm:$0xf]
    %v145 = vld [vmem:[#allocation7 + $0x8] sm:$0xf]
    %v146 = vld [vmem:[#allocation7 + $0xc] sm:$0xf]
    %v147 = vld [vmem:[%s7] sm:$0x1]
    %v149 = vlaneseq
    %v150 = vshrl.u32 %v149, 7
    %v151 = vsub.s32 0, %v150
    %v152 = vrot.slane %v147, %v151
    %v156 = vunpack.c.l.b16 %v141
    %v157 = vunpack.c.l.b16 %v142
    %v158 = vpack.c.b16 %v157, %v156
    %v163 = vunpack.c.l.b16 %v143
    %v164 = vunpack.c.l.b16 %v144
    %v165 = vunpack.c.l.b16 %v145
    %v166 = vunpack.c.l.b16 %v146
    %v167 = vpack.c.b16 %v164, %v163
    %v168 = vpack.c.b16 %v166, %v165
    %v172 = vsel %vm97, %v158, 0
    %174 = vmatprep.subr.bf16.mxu0 0
    %175 = vmatpush1.bf16.msra.mxu0 %v167
    %176 = vmatprep.subr.bf16.mxu0 0
    %177 = vmatpush1.bf16.msra.mxu0 %v168
    %178 = vmatprep.subr.bf16.mxu0 0
    %179 = vmatpush1.bf16.msra.mxu0 0
    %180 = vmatprep.subr.bf16.mxu0 0
    %181 = vmatpush1.bf16.msra.mxu0 0
    %182 = vmatprep.subr.bf16.mxu0 0
    %183 = vmatpush1.bf16.msra.mxu0 0
    %184 = vmatprep.subr.bf16.mxu0 0
    %185 = vmatpush1.bf16.msra.mxu0 0
    %186 = vmatprep.subr.bf16.mxu0 0
    %187 = vmatpush1.bf16.msra.mxu0 0
    %188 = vmatprep.subr.bf16.mxu0 0
    %189 = vmatpush1.bf16.msra.mxu0 0
    %190 = vmatprep.subr.bf16.mxu0 0
    %191 = vmatpush1.bf16.msra.mxu0 0
    %192 = vmatprep.subr.bf16.mxu0 0
    %193 = vmatpush1.bf16.msra.mxu0 0
    %194 = vmatprep.subr.bf16.mxu0 0
    %195 = vmatpush1.bf16.msra.mxu0 0
    %196 = vmatprep.subr.bf16.mxu0 0
    %197 = vmatpush1.bf16.msra.mxu0 0
    %198 = vmatprep.subr.bf16.mxu0 0
    %199 = vmatpush1.bf16.msra.mxu0 0
    %200 = vmatprep.subr.bf16.mxu0 0
    %201 = vmatpush1.bf16.msra.mxu0 0
    %202 = vmatprep.subr.bf16.mxu0 0
    %203 = vmatpush1.bf16.msra.mxu0 0
    %204 = vmatprep.subr.bf16.mxu0 0
    %205 = vmatpush1.bf16.msra.mxu0 0
    %206 = vmatprep.mubr.bf16.mxu0 0
    %207 = vmatmul.mubr.bf16.gmra.mrb[0].mxu0 %v172
    %v208 = vpop.f32.mrb[0].mxu0
    %v209 = vadd.f32 %v152, %v208
    %v210 = vpop.f32.mrb[0].mxu0
    %v211 = vpop.f32.mrb[0].mxu0
    %v212 = vadd.f32 %v152, %v211
    %v213 = vpop.f32.mrb[0].mxu0
    %214 = vdwg.mxu0
    %v217 = vunpack.c.l.s4 1966171168
    %v218 = vunpack.c.0.s8 %v217
    %v219 = vlaneseq
    %v220 = vshrl.u32 %v219, 7
    %v221 = vsub.s32 %v218, %v220
    %v222 = vrot.slane %v136, %v221
    %v223 = vcombine.high %v222, %v222
    %v225 = vunpack.c.l.s4 1966171168
    %v226 = vunpack.c.0.s8 %v225
    %v227 = vlaneseq
    %v228 = vshrl.u32 %v227, 7
    %v229 = vsub.s32 %v226, %v228
    %v230 = vrot.slane %v222, %v229
    %v232 = vunpack.c.l.s4 1966171168
    %v233 = vunpack.c.0.s8 %v232
    %v234 = vlaneseq
    %v235 = vshrl.u32 %v234, 7
    %v236 = vsub.s32 %v233, %v235
    %v237 = vrot.slane %v223, %v236
    %v238 = vlaneseq
    %v239 = vshrl.u32 %v238, 7
    %v240 = vsub.s32 0, %v239
    %v241 = vrot.slane %v230, %v240
    %v242 = vlaneseq
    %v243 = vshrl.u32 %v242, 7
    %v244 = vsub.s32 0, %v243
    %v245 = vrot.slane %v237, %v244
    %v248 = vmul.f32 %v241, %v209
    %v249 = vmul.f32 %v245, %v212
    %v250 = vsel %vm97, %v248, 0.0
    %251 = vadd.xlane.f32.xlu0 %v250
    %v252 = vpop.xlane.xlu0 %251
    %v253 = vsel %vm97, %v249, 0.0
    %254 = vadd.xlane.f32.xlu0 %v253
    %v255 = vpop.xlane.xlu0 %254
    %v256 = vld [vmem:[%s3] sm:$0x3]
    %v257 = vld [vmem:[%s2] sm:$0x3]
    %259 = vset.pattern.permute.xlu0 0
    %260 = vperm.xlu0 %259, %v256
    %v261 = vpop.permute.xlu0 %260
    %v263 = vsub.f32 %v261, %v257
    %v264 = vmul.f32 %v263, -0.01
    %v265 = vmul.f32 %v264, 1.442695
    %v266 = vpow.pop %v265
    %v268 = vlaneseq
    %v269 = vshrl.u32 %v268, 7
    %v270 = vsub.s32 0, %v269
    %v271 = vrot.slane %v266, %v270
    %273 = vbcast.lane.b32.xlu0 %v271, 256
    %v274 = vpop.permute.xlu0 %273
    %v275 = vlaneseq
    %v276 = vshrl.u32 %v275, 7
    %v277 = vsub.s32 1, %v276
    %v278 = vrot.slane %v266, %v277
    %280 = vbcast.lane.b32.xlu0 %v278, 256
    %v281 = vpop.permute.xlu0 %280
    %v284 = vmul.f32 %v252, %v274
    %v285 = vmul.f32 %v255, %v281
    %288 = vset.pattern.permute.xlu0 0
    %289 = vperm.xlu0 %288, %v284
    %v290 = vpop.permute.xlu0 %289
    %291 = vset.pattern.permute.xlu0 0
    %292 = vperm.xlu0 %291, %v285
    %v293 = vpop.permute.xlu0 %292
    %v294 = vlaneseq
    %v295 = vand.u32 %v294, 127
    %v296 = vlaneseq
    %v297 = vshrl.u32 %v296, 7
    %v298 = vsub.s32 %v295, %v297
    %v299 = vrot.slane %v290, %v298
    %v300 = vlaneseq
    %v301 = vshrl.u32 %v300, 7
    %v302 = vsub.s32 %v295, %v301
    %v303 = vrot.slane %v293, %v302
    %vm304 = vcmask 1041409
    %v305 = vsel %vm304, %v303, %v299
    %vm307 = vcmask 58368
    %v308 = vsel %vm307, %v305, -inf
    %309 = vmax.xlane.f32.xlu0 %v308
    %v310 = vpop.xlane.xlu0 %309
    %v312 = vlaneseq
    %v313 = vshrl.u32 %v312, 7
    %v314 = vsub.s32 0, %v313
    %v315 = vrot.slane %v310, %v314
    %v316 = vlaneseq
    %v317 = vshrl.u32 %v316, 7
    %v318 = vsub.s32 1, %v317
    %v319 = vrot.slane %v310, %v318
    %v322 = vsub.f32 %v284, %v315
    %v323 = vsub.f32 %v285, %v319
    %v324 = vmul.f32 %v322, 1.442695
    %v325 = vpow.pop %v324
    %v326 = vmul.f32 %v323, 1.442695
    %v327 = vpow.pop %v326
    %330 = vset.pattern.permute.xlu0 0
    %331 = vperm.xlu0 %330, %v325
    %v332 = vpop.permute.xlu0 %331
    %333 = vset.pattern.permute.xlu0 0
    %334 = vperm.xlu0 %333, %v327
    %v335 = vpop.permute.xlu0 %334
    %v336 = vlaneseq
    %v337 = vshrl.u32 %v336, 7
    %v338 = vsub.s32 %v295, %v337
    %v339 = vrot.slane %v332, %v338
    %v340 = vlaneseq
    %v341 = vshrl.u32 %v340, 7
    %v342 = vsub.s32 %v295, %v341
    %v343 = vrot.slane %v335, %v342
    %v344 = vsel %vm304, %v343, %v339
    %v346 = vsel %vm307, %v344, 0.0
    %347 = vadd.xlane.f32.xlu0 %v346
    %v348 = vpop.xlane.xlu0 %347
    %v350 = vlaneseq
    %v351 = vshrl.u32 %v350, 7
    %v352 = vsub.s32 0, %v351
    %v353 = vrot.slane %v348, %v352
    %v354 = vlaneseq
    %v355 = vshrl.u32 %v354, 7
    %v356 = vsub.s32 1, %v355
    %v357 = vrot.slane %v348, %v356
    %v360 = vrcp.pop %v353
    %v361 = vmul.f32 %v325, %v360
    %v362 = vrcp.pop %v357
    %v363 = vmul.f32 %v327, %v362
    %365 = vset.pattern.permute.xlu0 0
    %366 = vperm.xlu0 %365, %v361
    %v367 = vpop.permute.xlu0 %366
    %370 = vset.pattern.permute.xlu0 0
    %371 = vperm.xlu0 %370, %v363
    %v372 = vpop.permute.xlu0 %371
    %v374 = vmul.f32 %v367, %v209
    %v375 = vmul.f32 %v372, %v212
    %vm376 = vcmask 523520
    %v377 = vsel %vm376, %v374, 0.0
    %v378 = vrot.slane %v377, 4
    %v379 = vadd.f32 %v377, %v378
    %v380 = vrot.slane %v379, 2
    %v381 = vadd.f32 %v379, %v380
    %v382 = vrot.slane %v381, 1
    %v383 = vadd.f32 %v381, %v382
    %v384 = vsel %vm376, %v375, 0.0
    %v385 = vrot.slane %v384, 4
    %v386 = vadd.f32 %v384, %v385
    %v387 = vrot.slane %v386, 2
    %v388 = vadd.f32 %v386, %v387
    %v389 = vrot.slane %v388, 1
    %v390 = vadd.f32 %v388, %v389
    %v393 = vsel %vm304, %v390, %v383
    %394 = vrot.lane.b32.xlu0 %v393, 96
    %v395 = vpop.permute.xlu0 %394
    %vm397 = vcmask 254976
    %398 = vst.msk [vmem:[#allocation8] sm:$0x3] %vm397, %v395
    %v399 = vlaneseq
    %v400 = vshrl.u32 %v399, 7
    %v401 = vsub.s32 %v295, %v400
    %v402 = vrot.slane %v367, %v401
    %v403 = vlaneseq
    %v404 = vshrl.u32 %v403, 7
    %v405 = vsub.s32 %v295, %v404
    %v406 = vrot.slane %v372, %v405
    %v407 = vsel %vm304, %v406, %v402
    %409 = vst.msk [vmem:[#allocation9] sm:$0x3] %vm307, %v407
    // Predicated region
    $region46: #{tpu_custom_call.1} parent=1 // pred_check
      _
    $region47: #{tpu_custom_call.1} parent=1 // pred_check_branch
      %411 = sbr.rel (0) target = $region49
    $region48: #{tpu_custom_call.1} parent=1 // pred_region
      %s413 = ssub.s32 32, 32
      %414 = vsyncadd [#allocation4], %s413
      %s416 = sshll.u32 [#allocation8], 4
      %s417 = int_to_ptr.vmem [resolvable:$true] %s416
      %419 = dma.vmem_to_hbm [thread:$0]  %s417, 32, %s8, [#allocation4]
    $region49: #{tpu_custom_call.1} parent=1 // pred_fallthru
      _
    // Predicated region
    $region50: #{tpu_custom_call.1} parent=1 // pred_check
      _
    $region51: #{tpu_custom_call.1} parent=1 // pred_check_branch
      %421 = sbr.rel (0) target = $region53
    $region52: #{tpu_custom_call.1} parent=1 // pred_region
      %s423 = ssub.s32 32, 32
      %424 = vsyncadd [#allocation10], %s423
      %s426 = sshll.u32 [#allocation9], 4
      %s427 = int_to_ptr.vmem [resolvable:$true] %s426
      %429 = dma.vmem_to_hbm [thread:$0]  %s427, 32, %s9, [#allocation10]
    $region53: #{tpu_custom_call.1} parent=1 // pred_fallthru
      _
    // Predicated region
    $region54: #{tpu_custom_call.1} parent=1 // pred_check
      _
    $region55: #{tpu_custom_call.1} parent=1 // pred_check_branch
      %431 = sbr.rel (0) target = $region57
    $region56: #{tpu_custom_call.1} parent=1 // pred_region
      %432 = dma.done [#allocation4], 32
    $region57: #{tpu_custom_call.1} parent=1 // pred_fallthru
      _
    // Predicated region
    $region58: #{tpu_custom_call.1} parent=1 // pred_check
      _
    $region59: #{tpu_custom_call.1} parent=1 // pred_check_branch
      %434 = sbr.rel (0) target = $region61
    $region60: #{tpu_custom_call.1} parent=1 // pred_region
      %435 = dma.done [#allocation10], 32
    $region61: #{tpu_custom_call.1} parent=1 // pred_fallthru
      _
    %436 = vsyncpa [#allocation3], 1
    %437 = vsyncpa [#allocation6], 1
    %438 = vsyncpa [#allocation4], 1
    %439 = vsyncpa [#allocation10], 1

</llo_original>
